<compile_context>
chip_gen: v6e
topology: v6e:2x2x1
jax: 0.10.0
libtpu: 0.0.40
codegen_flags: <defaults>
</compile_context>

<pallas_src>
import functools

import jax
import jax.numpy as jnp
from jax import lax
from jax.experimental import pallas as pl
from jax.experimental.pallas import tpu as pltpu


def _layout(n):
    """Lane-dense layout for n per-sensor keys: (8, cols) with cols % 128 == 0."""
    cols = ((max(n, 1) + 7) // 8 + 127) // 128 * 128
    capacity = 8 * cols
    idx_bits = max(1, (capacity - 1).bit_length())  # bits needed to encode a slot index
    return cols, capacity, idx_bits


def _make_priorities(key, n):
    """Random int32 priorities, one per slot, laid out as an (8, cols) slab."""
    cols, capacity, idx_bits = _layout(n)
    prio_bits = 31 - idx_bits
    assert prio_bits >= 8, "sensor count too large for 32-bit packed keys"
    # TODO(synk): for gigantic n, split into multiple slabs / grid steps and merge
    # per-slab top-k candidates; not needed at these sizes.
    prio = jax.random.randint(key, (capacity,), 0, 1 << prio_bits, dtype=jnp.int32)
    return prio.reshape(8, cols), capacity, idx_bits


def _randperm_topk_kernel(prio_ref, out_ref, *, n, top_k, capacity, idx_bits):
    # prio_ref: (8, cols) int32 random priorities in VMEM (lane-dense).
    # out_ref:  (top_k,) int32 selected sensor indices in SMEM.
    rows, cols = prio_ref.shape
    row = lax.broadcasted_iota(jnp.int32, (rows, cols), 0)
    col = lax.broadcasted_iota(jnp.int32, (rows, cols), 1)
    lin = row * cols + col                      # linear sensor index of each slot

    # Fused ordering key: priority in the high bits, (capacity-1-lin) in the low
    # bits.  A single jnp.max then yields both the winning priority and its
    # index, with ties broken toward the smaller index.  Padded slots get -1 so
    # they can never win (all valid keys are >= 0).
    packed = prio_ref[...] * jnp.int32(1 << idx_bits) + (jnp.int32(capacity - 1) - lin)
    packed = jnp.where(lin < n, packed, jnp.int32(-1))

    idx_mask = jnp.int32((1 << idx_bits) - 1)
    # top_k is small and static: unrolled loop; the working key slab stays in
    # vregs the whole time (no VMEM scratch, one XLU reduction per selection).
    for kk in range(top_k):
        best = jnp.max(packed)
        idx = jnp.int32(capacity - 1) - (best & idx_mask)
        out_ref[kk] = idx
        packed = jnp.where(lin == idx, jnp.int32(-1), packed)


def random_select(x, key, top_k):
    """RandomSelector.forward: top_k distinct uniformly-random indices in [0, x.shape[0])."""
    n = x.shape[0]
    if top_k > n:
        raise ValueError(f"top_k={top_k} exceeds number of sensors n={n}")

    prio2d, capacity, idx_bits = _make_priorities(key, n)
    kernel = functools.partial(
        _randperm_topk_kernel, n=n, top_k=top_k, capacity=capacity, idx_bits=idx_bits
    )
    return pl.pallas_call(
        kernel,
        out_shape=jax.ShapeDtypeStruct((top_k,), jnp.int32),
        in_specs=[pl.BlockSpec(memory_space=pltpu.MemorySpace.VMEM)],   # priority slab
        out_specs=pl.BlockSpec(memory_space=pltpu.MemorySpace.SMEM),    # indices
        cost_estimate=pl.CostEstimate(
            flops=capacity * (top_k + 2),
            transcendentals=0,
            bytes_accessed=capacity * 4 + top_k * 4,
        ),
    )(prio2d)


if __name__ == "__main__":
    key = jax.random.PRNGKey(0)
    kx, ksel = jax.random.split(key)

    num_sensors, feat = 16, 32
    top_k = 4

    # X is only consulted for its leading dimension (as in the torch module).
    x = jax.random.normal(kx, (num_sensors, feat), dtype=jnp.float32)

    inds = random_select(x, ksel, top_k)
    jax.block_until_ready(inds)
    inds = jnp.asarray(inds)

    # Pure-JAX reference built from the identical random priorities.
    prio2d, capacity, idx_bits = _make_priorities(ksel, num_sensors)
    lin = jnp.arange(capacity, dtype=jnp.int32)
    packed = jnp.where(
        lin < num_sensors,
        prio2d.reshape(-1) * (1 << idx_bits) + (capacity - 1 - lin),
        jnp.int32(-1),
    )
    ref = jnp.argsort(-packed)[:top_k].astype(jnp.int32)

    assert jnp.array_equal(inds, ref), (inds, ref)
    # RandomSelector semantics: distinct indices, all within [0, num_sensors).
    assert inds.shape == (top_k,)
    assert bool(jnp.all((inds >= 0) & (inds < num_sensors)))
    assert int(jnp.unique(inds).shape[0]) == top_k
    print("KERNEL_OK")
</pallas_src>

<mosaic_0001>
module attributes {stable_mosaic.version = 11 : i64} {
  func.func @_randperm_topk_kernel(%arg0: memref<8x128xi32, #tpu.memory_space<vmem>>, %arg1: memref<4xi32, #tpu.memory_space<smem>>) attributes {dimension_semantics = [], scalar_prefetch = 0 : i64, scratch_operands = 0 : i64, tpu.core_type = #tpu.core_type<tc>} {
    %0 = tpu.iota {dimensions = array<i32: 0>} : vector<8x128xi32>
    %1 = tpu.iota {dimensions = array<i32: 1>} : vector<8x128xi32>
    %c128_i32 = arith.constant 128 : i32
    %2 = vector.broadcast %c128_i32 : i32 to vector<8x128xi32>
    %3 = arith.muli %0, %2 : vector<8x128xi32>
    %4 = arith.addi %3, %1 : vector<8x128xi32>
    %c0 = arith.constant 0 : index
    %c0_0 = arith.constant 0 : index
    %5 = vector.load %arg0[%c0, %c0_0] : memref<8x128xi32, #tpu.memory_space<vmem>>, vector<8x128xi32>
    %c1024_i32 = arith.constant 1024 : i32
    %6 = vector.broadcast %c1024_i32 : i32 to vector<8x128xi32>
    %7 = arith.muli %5, %6 : vector<8x128xi32>
    %c1023_i32 = arith.constant 1023 : i32
    %8 = vector.broadcast %c1023_i32 : i32 to vector<8x128xi32>
    %9 = arith.subi %8, %4 : vector<8x128xi32>
    %10 = arith.addi %7, %9 : vector<8x128xi32>
    %c16_i32 = arith.constant 16 : i32
    %11 = vector.broadcast %c16_i32 : i32 to vector<8x128xi32>
    %12 = arith.cmpi slt, %4, %11 : vector<8x128xi32>
    %c-1_i32 = arith.constant -1 : i32
    %13 = vector.broadcast %c-1_i32 : i32 to vector<8x128xi32>
    %14 = arith.select %12, %10, %13 : vector<8x128xi1>, vector<8x128xi32>
    %15 = vector.shape_cast %14 : vector<8x128xi32> to vector<1x8x128xi32>
    %cst = arith.constant dense<-2147483648> : vector<1xi32>
    %16 = vector.multi_reduction <maxsi>, %15, %cst [1, 2] : vector<1x8x128xi32> to vector<1xi32>
    %17 = vector.shape_cast %16 : vector<1xi32> to vector<1x1x1xi32>
    %18 = vector.extract %17[0, 0, 0] : i32 from vector<1x1x1xi32>
    %c1023_i32_1 = arith.constant 1023 : i32
    %19 = arith.andi %18, %c1023_i32_1 : i32
    %c1023_i32_2 = arith.constant 1023 : i32
    %20 = arith.subi %c1023_i32_2, %19 : i32
    %c0_3 = arith.constant 0 : index
    %21 = memref.load %arg1[%c0_3] : memref<4xi32, #tpu.memory_space<smem>>
    memref.store %20, %arg1[%c0_3] : memref<4xi32, #tpu.memory_space<smem>>
    %22 = vector.broadcast %20 : i32 to vector<8x128xi32>
    %23 = arith.cmpi eq, %4, %22 : vector<8x128xi32>
    %c-1_i32_4 = arith.constant -1 : i32
    %24 = vector.broadcast %c-1_i32_4 : i32 to vector<8x128xi32>
    %25 = arith.select %23, %24, %14 : vector<8x128xi1>, vector<8x128xi32>
    %26 = vector.shape_cast %25 : vector<8x128xi32> to vector<1x8x128xi32>
    %cst_5 = arith.constant dense<-2147483648> : vector<1xi32>
    %27 = vector.multi_reduction <maxsi>, %26, %cst_5 [1, 2] : vector<1x8x128xi32> to vector<1xi32>
    %28 = vector.shape_cast %27 : vector<1xi32> to vector<1x1x1xi32>
    %29 = vector.extract %28[0, 0, 0] : i32 from vector<1x1x1xi32>
    %c1023_i32_6 = arith.constant 1023 : i32
    %30 = arith.andi %29, %c1023_i32_6 : i32
    %c1023_i32_7 = arith.constant 1023 : i32
    %31 = arith.subi %c1023_i32_7, %30 : i32
    %c1 = arith.constant 1 : index
    %32 = memref.load %arg1[%c1] : memref<4xi32, #tpu.memory_space<smem>>
    memref.store %31, %arg1[%c1] : memref<4xi32, #tpu.memory_space<smem>>
    %33 = vector.broadcast %31 : i32 to vector<8x128xi32>
    %34 = arith.cmpi eq, %4, %33 : vector<8x128xi32>
    %c-1_i32_8 = arith.constant -1 : i32
    %35 = vector.broadcast %c-1_i32_8 : i32 to vector<8x128xi32>
    %36 = arith.select %34, %35, %25 : vector<8x128xi1>, vector<8x128xi32>
    %37 = vector.shape_cast %36 : vector<8x128xi32> to vector<1x8x128xi32>
    %cst_9 = arith.constant dense<-2147483648> : vector<1xi32>
    %38 = vector.multi_reduction <maxsi>, %37, %cst_9 [1, 2] : vector<1x8x128xi32> to vector<1xi32>
    %39 = vector.shape_cast %38 : vector<1xi32> to vector<1x1x1xi32>
    %40 = vector.extract %39[0, 0, 0] : i32 from vector<1x1x1xi32>
    %c1023_i32_10 = arith.constant 1023 : i32
    %41 = arith.andi %40, %c1023_i32_10 : i32
    %c1023_i32_11 = arith.constant 1023 : i32
    %42 = arith.subi %c1023_i32_11, %41 : i32
    %c2 = arith.constant 2 : index
    %43 = memref.load %arg1[%c2] : memref<4xi32, #tpu.memory_space<smem>>
    memref.store %42, %arg1[%c2] : memref<4xi32, #tpu.memory_space<smem>>
    %44 = vector.broadcast %42 : i32 to vector<8x128xi32>
    %45 = arith.cmpi eq, %4, %44 : vector<8x128xi32>
    %c-1_i32_12 = arith.constant -1 : i32
    %46 = vector.broadcast %c-1_i32_12 : i32 to vector<8x128xi32>
    %47 = arith.select %45, %46, %36 : vector<8x128xi1>, vector<8x128xi32>
    %48 = vector.shape_cast %47 : vector<8x128xi32> to vector<1x8x128xi32>
    %cst_13 = arith.constant dense<-2147483648> : vector<1xi32>
    %49 = vector.multi_reduction <maxsi>, %48, %cst_13 [1, 2] : vector<1x8x128xi32> to vector<1xi32>
    %50 = vector.shape_cast %49 : vector<1xi32> to vector<1x1x1xi32>
    %51 = vector.extract %50[0, 0, 0] : i32 from vector<1x1x1xi32>
    %c1023_i32_14 = arith.constant 1023 : i32
    %52 = arith.andi %51, %c1023_i32_14 : i32
    %c1023_i32_15 = arith.constant 1023 : i32
    %53 = arith.subi %c1023_i32_15, %52 : i32
    %c3 = arith.constant 3 : index
    %54 = memref.load %arg1[%c3] : memref<4xi32, #tpu.memory_space<smem>>
    memref.store %53, %arg1[%c3] : memref<4xi32, #tpu.memory_space<smem>>
    return
  }
}

</mosaic_0001>

<llo_original>
// kernel: tpu_custom_call.1
$region0: #{tpu_custom_call.1}
  #allocation0 [shape = 'u32[]', space=smem, size = 0x4, offset = 0x4, fixed_abs, tag = 'smem constant byte address 0x4 - core index']
  #allocation1 [shape = 'u32[144,128]{1,0:T(1,128)}', space=vmem, size = 0x12000, scoped, tag = 'internal scratch']
  %s0 = inlined_call_operand.hbm [shape: s32[8,128], index: 0, kind: input, shape index: {}]
  %s1 = inlined_call_operand.hbm [shape: s32[4], index: 1, kind: output, shape index: {}]
  %s2 = sld [smem:[#allocation0]]
  $region18: #{tpu_custom_call.1} parent=0
    _
  %s4 = ssub.s32 1, %s2
  %s5 = scalar_select 0, %s4, %s2
  $region1: #{tpu_custom_call.1} parent=0
    #allocation2 [shape = 'u8[4096]{0}', space=vmem, size = 0x1000, scoped, tag = 'input window, operand 0, single buffered']
    #allocation3 [shape = 's32[1]{0}', space=sflag, size = 0x4, scoped, tag = 'scoped memory for tpu_custom_call.1']
    #allocation4 [shape = 's32[1]{0}', space=sflag, size = 0x4, scoped, tag = 'scoped memory for tpu_custom_call.1']
    #allocation5 [shape = 'u8[512]{0}', space=smem, size = 0x200, scoped, tag = 'output window, operand 0, single buffered']
    %6 = vsyncpa [#allocation3], 0
    %7 = vsyncpa [#allocation4], 0
    // Predicated region
    $region2: #{tpu_custom_call.1} parent=1 // pred_check
      _
    $region3: #{tpu_custom_call.1} parent=1 // pred_check_branch
      %9 = sbr.rel (0) target = $region5
    $region4: #{tpu_custom_call.1} parent=1 // pred_region
      %s11 = ssub.s32 128, 128
      %12 = vsyncadd [#allocation3], %s11
      %s14 = sshll.u32 [#allocation2], 4
      %s15 = int_to_ptr.vmem [resolvable:$true] %s14
      %17 = dma.hbm_to_vmem [thread:$0]  %s0, 128, %s15, [#allocation3]
    $region5: #{tpu_custom_call.1} parent=1 // pred_fallthru
      _
    // Predicated region
    $region6: #{tpu_custom_call.1} parent=1 // pred_check
      _
    $region7: #{tpu_custom_call.1} parent=1 // pred_check_branch
      %19 = sbr.rel (0) target = $region9
    $region8: #{tpu_custom_call.1} parent=1 // pred_region
      %20 = dma.done [#allocation3], 128
    $region9: #{tpu_custom_call.1} parent=1 // pred_fallthru
      _
    %v21 = vlaneseq
    %v22 = vshrl.u32 %v21, 7
    %v23 = vlaneseq
    %v24 = vand.u32 %v23, 127
    %v25 = vmul.u32 %v22, 128
    %v26 = vadd.s32 %v25, %v24
    %v27 = vld [vmem:[#allocation2] sm:$0xff]
    %v28 = vmul.u32 %v27, 1024
    %v29 = vsub.s32 1023, %v26
    %v30 = vadd.s32 %v28, %v29
    %vm31 = vcmp.lt.s32.totalorder %v26, 16
    %v32 = vsel %vm31, %v30, 4294967295
    %v33 = vand.u32 %v32, 65535
    %v34 = vshra.s32 %v32, 16
    %v35 = vcvt.s32.f32 %v33
    %v36 = vcvt.s32.f32 %v34
    %37 = vmax.xlane.f32.xlu0 %v36
    %v38 = vpop.xlane.xlu0 %37
    %vm39 = vcmp.eq.f32.partialorder %v36, %v38
    %v40 = vsel %vm39, %v35, -inf
    %41 = vmax.xlane.f32.xlu0 %v40
    %v42 = vpop.xlane.xlu0 %41
    %v43 = vcvt.f32.s32 %v42
    %v44 = vcvt.f32.s32 %v38
    %v45 = vshll.u32 %v44, 16
    %v46 = vadd.s32 %v45, %v43
    %v47 = vrot.slane %v46, 4
    %vm48 = vcmp.gt.s32.totalorder %v46, %v47
    %v49 = vsel %vm48, %v46, %v47
    %v50 = vrot.slane %v49, 2
    %vm51 = vcmp.gt.s32.totalorder %v49, %v50
    %v52 = vsel %vm51, %v49, %v50
    %v53 = vrot.slane %v52, 1
    %vm54 = vcmp.gt.s32.totalorder %v52, %v53
    %v55 = vsel %vm54, %v52, %v53
    %s56 = vtos %v55
    %s57 = sand.u32 %s56, 1023
    %s58 = ssub.s32 1023, %s57
    %s59 = scalar_lea.smem [#allocation5], 0
    %60 = sst [smem:[%s59]] %s58
    %v61 = vstv %s58
    %vm62 = vcmp.eq.s32.totalorder %v26, %v61
    %v63 = vsel %vm62, 4294967295, %v32
    %v64 = vand.u32 %v63, 65535
    %v65 = vshra.s32 %v63, 16
    %v66 = vcvt.s32.f32 %v64
    %v67 = vcvt.s32.f32 %v65
    %68 = vmax.xlane.f32.xlu0 %v67
    %v69 = vpop.xlane.xlu0 %68
    %vm70 = vcmp.eq.f32.partialorder %v67, %v69
    %v71 = vsel %vm70, %v66, -inf
    %72 = vmax.xlane.f32.xlu0 %v71
    %v73 = vpop.xlane.xlu0 %72
    %v74 = vcvt.f32.s32 %v73
    %v75 = vcvt.f32.s32 %v69
    %v76 = vshll.u32 %v75, 16
    %v77 = vadd.s32 %v76, %v74
    %v78 = vrot.slane %v77, 4
    %vm79 = vcmp.gt.s32.totalorder %v77, %v78
    %v80 = vsel %vm79, %v77, %v78
    %v81 = vrot.slane %v80, 2
    %vm82 = vcmp.gt.s32.totalorder %v80, %v81
    %v83 = vsel %vm82, %v80, %v81
    %v84 = vrot.slane %v83, 1
    %vm85 = vcmp.gt.s32.totalorder %v83, %v84
    %v86 = vsel %vm85, %v83, %v84
    %s87 = vtos %v86
    %s88 = sand.u32 %s87, 1023
    %s89 = ssub.s32 1023, %s88
    %s90 = scalar_lea.smem [#allocation5], 1
    %91 = sst [smem:[%s90]] %s89
    %v92 = vstv %s89
    %vm93 = vcmp.eq.s32.totalorder %v26, %v92
    %v94 = vsel %vm93, 4294967295, %v63
    %v95 = vand.u32 %v94, 65535
    %v96 = vshra.s32 %v94, 16
    %v97 = vcvt.s32.f32 %v95
    %v98 = vcvt.s32.f32 %v96
    %99 = vmax.xlane.f32.xlu0 %v98
    %v100 = vpop.xlane.xlu0 %99
    %vm101 = vcmp.eq.f32.partialorder %v98, %v100
    %v102 = vsel %vm101, %v97, -inf
    %103 = vmax.xlane.f32.xlu0 %v102
    %v104 = vpop.xlane.xlu0 %103
    %v105 = vcvt.f32.s32 %v104
    %v106 = vcvt.f32.s32 %v100
    %v107 = vshll.u32 %v106, 16
    %v108 = vadd.s32 %v107, %v105
    %v109 = vrot.slane %v108, 4
    %vm110 = vcmp.gt.s32.totalorder %v108, %v109
    %v111 = vsel %vm110, %v108, %v109
    %v112 = vrot.slane %v111, 2
    %vm113 = vcmp.gt.s32.totalorder %v111, %v112
    %v114 = vsel %vm113, %v111, %v112
    %v115 = vrot.slane %v114, 1
    %vm116 = vcmp.gt.s32.totalorder %v114, %v115
    %v117 = vsel %vm116, %v114, %v115
    %s118 = vtos %v117
    %s119 = sand.u32 %s118, 1023
    %s120 = ssub.s32 1023, %s119
    %s121 = scalar_lea.smem [#allocation5], 2
    %122 = sst [smem:[%s121]] %s120
    %v123 = vstv %s120
    %vm124 = vcmp.eq.s32.totalorder %v26, %v123
    %v125 = vsel %vm124, 4294967295, %v94
    %v126 = vand.u32 %v125, 65535
    %v127 = vshra.s32 %v125, 16
    %v128 = vcvt.s32.f32 %v126
    %v129 = vcvt.s32.f32 %v127
    %130 = vmax.xlane.f32.xlu0 %v129
    %v131 = vpop.xlane.xlu0 %130
    %vm132 = vcmp.eq.f32.partialorder %v129, %v131
    %v133 = vsel %vm132, %v128, -inf
    %134 = vmax.xlane.f32.xlu0 %v133
    %v135 = vpop.xlane.xlu0 %134
    %v136 = vcvt.f32.s32 %v135
    %v137 = vcvt.f32.s32 %v131
    %v138 = vshll.u32 %v137, 16
    %v139 = vadd.s32 %v138, %v136
    %v140 = vrot.slane %v139, 4
    %vm141 = vcmp.gt.s32.totalorder %v139, %v140
    %v142 = vsel %vm141, %v139, %v140
    %v143 = vrot.slane %v142, 2
    %vm144 = vcmp.gt.s32.totalorder %v142, %v143
    %v145 = vsel %vm144, %v142, %v143
    %v146 = vrot.slane %v145, 1
    %vm147 = vcmp.gt.s32.totalorder %v145, %v146
    %v148 = vsel %vm147, %v145, %v146
    %s149 = vtos %v148
    %s150 = sand.u32 %s149, 1023
    %s151 = ssub.s32 1023, %s150
    %s152 = scalar_lea.smem [#allocation5], 3
    %153 = sst [smem:[%s152]] %s151
    // Predicated region
    $region10: #{tpu_custom_call.1} parent=1 // pred_check
      _
    $region11: #{tpu_custom_call.1} parent=1 // pred_check_branch
      %155 = sbr.rel (0) target = $region13
    $region12: #{tpu_custom_call.1} parent=1 // pred_region
      %s157 = ssub.s32 16, 16
      %158 = vsyncadd [#allocation4], %s157
      %161 = dma.smem_to_hbm [#allocation5], 16, %s1, [#allocation4]
    $region13: #{tpu_custom_call.1} parent=1 // pred_fallthru
      _
    // Predicated region
    $region14: #{tpu_custom_call.1} parent=1 // pred_check
      _
    $region15: #{tpu_custom_call.1} parent=1 // pred_check_branch
      %163 = sbr.rel (0) target = $region17
    $region16: #{tpu_custom_call.1} parent=1 // pred_region
      %164 = dma.done [#allocation4], 16
    $region17: #{tpu_custom_call.1} parent=1 // pred_fallthru
      _
    %165 = sfence
    %166 = vsyncpa [#allocation3], 1
    %167 = vsyncpa [#allocation4], 1

</llo_original>
